<compile_context>
chip_gen: v7x
topology: tpu7x:2x2x1
jax: 0.10.0
libtpu: 0.0.40
codegen_flags: <defaults>
</compile_context>

<pallas_src>
import math

import jax
import jax.numpy as jnp
from jax.experimental import pallas as pl
from jax.experimental.pallas import tpu as pltpu


def _bahdanau_kernel(slab_ref, wkq_ref, we_ref, wexp_ref, wred_ref, out_ref):
    # slab_ref: (TB, G*D + Q) bf16   [x group vectors | query]
    # wkq_ref : (G*D + Q, G*H) bf16  vstack([kron(I_G, Wk^T), tile(Wq^T,(1,G))])
    # we_ref  : (G*H, G)       bf16  kron(I_G, we^T)           (all group scores)
    # wexp_ref: (G, G*D)       bf16  kron(I_G, ones(1,D))      (alpha lane-broadcast)
    # wred_ref: (G*D, D)       bf16  tile(I_D, (G,1))          (sum over groups)
    # out_ref : (TB, D)        f32
    GD = wred_ref.shape[0]                       # G*D (multiple of 128 here)

    slab = slab_ref[...]                         # (TB, G*D+Q) bf16
    x = slab[:, :GD]                             # static, tile-aligned slice (no copy)

    # hk + hq for every group in ONE bf16 MXU matmul (query fused via weight stack).
    e = jnp.tanh(jnp.dot(slab, wkq_ref[...],
                         preferred_element_type=jnp.float32))           # (TB, G*H) f32

    # All group scores at once: tiny MXU matmul instead of per-group XLU lane
    # reductions (tanh output is in [-1,1], so bf16 here cannot overflow and
    # score precision never reaches the output — only finiteness does).
    s = jnp.dot(e.astype(we_ref.dtype), we_ref[...],
                preferred_element_type=jnp.float32)                     # (TB, G) f32

    # torch nn.Softmax(dim=-1) over the module's size-1 trailing score axis is
    # degenerate: alphas == 1 for finite scores, NaN propagates for NaN/+-Inf.
    ex = jnp.exp(s - s)                                                  # 1 or NaN
    a = ex / ex                                                          # (TB, G)

    # Broadcast per-group alpha across that group's D lanes, weight the inputs,
    # and sum the G group vectors — all as small lane-dense MXU matmuls.
    a_full = jnp.dot(a.astype(wexp_ref.dtype), wexp_ref[...],
                     preferred_element_type=jnp.float32)                 # (TB, G*D)
    w = (a_full * x).astype(wred_ref.dtype)      # exact: a in {1, NaN}, x already bf16
    out = jnp.dot(w, wred_ref[...], preferred_element_type=jnp.float32)  # (TB, D)
    out_ref[...] = out.astype(out_ref.dtype)


def _choose_batch_tile(B):
    """Batch tile: ~2 MiB bf16 input per grid step, >=2 steps when B is large
    (v7x megacore), multiple of 16 (bf16 sublane packing).  At TB=4096 the
    double-buffered blocks stay well under v5e's 16 MiB scoped-VMEM default;
    raise vmem_limit_bytes if this target is ever increased."""
    target = 4096
    if B <= 16:
        return B                       # block == full dim (always legal)
    half = (B + 1) // 2
    tb = min(target, half)
    tb = max(16, (tb // 16) * 16)
    return tb


def bahdanau_attention(inp, query, w_key, w_query, w_energy,
                       md_dim, query_dim, md_group_size, use_null_token=False,
                       stream_dtype=jnp.bfloat16):
    """Pallas forward of BahdanauAttention (3-D input / 2-D query path).

    inp:      reshaped to (B, md_group_size, md_dim)  (as .view(-1, G, D))
    query:    reshaped to (B, query_dim)
    w_key:    (H, md_dim)    PyTorch nn.Linear weight (H == md_dim), bias=False
    w_query:  (H, query_dim) bias=False
    w_energy: (1, H)         bias=False
    """
    # TODO(synk): seq-major branch (3-D query / 4-D input) of the reference
    # forward is not implemented; this covers the 2-D-query / 3-D-input branch.
    # TODO(synk): the enclosing ConcatLSTM recurrence / MetadataConstructor
    # projection+layernorm layers are outside this kernel's scope.
    inp = jnp.reshape(inp, (-1, md_group_size, md_dim))
    query = jnp.reshape(query, (-1, query_dim))
    B = inp.shape[0]

    if use_null_token:
        zeros = jnp.zeros((B, 1, md_dim), dtype=inp.dtype)
        inp = jnp.concatenate([inp, zeros], axis=1)
    G = inp.shape[1]
    D = md_dim
    H = w_key.shape[0]                  # hidden_dim == md_dim
    Q = query_dim
    GD, GH = G * D, G * H

    # Single lane-dense bf16 slab: [flattened group vectors | query] per row.
    # (one DMA stream; the bf16 cast/concat is a single wrapper-side pass)
    slab = jnp.concatenate(
        [inp.reshape(B, GD).astype(stream_dtype),
         query.astype(stream_dtype)], axis=-1)                 # (B, GD + Q)

    # Fold group axis + query into one weight stack (built once, tiny).
    wk_t = jnp.asarray(w_key, jnp.float32).T                   # (D, H)
    wq_t = jnp.asarray(w_query, jnp.float32).T                 # (Q, H)
    wk_big = jnp.kron(jnp.eye(G, dtype=jnp.float32), wk_t)     # (G*D, G*H)
    wq_big = jnp.tile(wq_t, (1, G))                            # (Q,   G*H)
    w_kq = jnp.concatenate([wk_big, wq_big], axis=0).astype(stream_dtype)
    # Per-group score / broadcast / group-sum matrices (0/1 or we values).
    w_e = jnp.kron(jnp.eye(G, dtype=jnp.float32),
                   jnp.asarray(w_energy, jnp.float32).reshape(H, 1)
                   ).astype(stream_dtype)                      # (G*H, G)
    w_expand = jnp.kron(jnp.eye(G, dtype=jnp.float32),
                        jnp.ones((1, D), jnp.float32)).astype(stream_dtype)  # (G, G*D)
    w_reduce = jnp.tile(jnp.eye(D, dtype=jnp.float32), (G, 1)).astype(stream_dtype)  # (G*D, D)

    TB = _choose_batch_tile(B)
    n_steps = pl.cdiv(B, TB)            # ragged tail block: garbage rows dropped

    out = pl.pallas_call(
        _bahdanau_kernel,
        out_shape=jax.ShapeDtypeStruct((B, D), jnp.float32),
        grid=(n_steps,),
        in_specs=[
            pl.BlockSpec((TB, GD + Q), lambda b: (b, 0)),
            # Constant index maps -> weights stay VMEM-resident across steps.
            pl.BlockSpec((GD + Q, GH), lambda b: (0, 0)),
            pl.BlockSpec((GH, G), lambda b: (0, 0)),
            pl.BlockSpec((G, GD), lambda b: (0, 0)),
            pl.BlockSpec((GD, D), lambda b: (0, 0)),
        ],
        out_specs=pl.BlockSpec((TB, D), lambda b: (b, 0)),
        compiler_params=pltpu.CompilerParams(
            dimension_semantics=("parallel",)),
    )(slab, w_kq, w_e, w_expand, w_reduce)

    # PyTorch: torch.matmul(alphas, input).squeeze()  -> (B, 1, D).squeeze()
    return jnp.squeeze(out[:, None, :])


def _reference(inp, query, w_key, w_query, w_energy,
               md_dim, query_dim, md_group_size, use_null_token=False):
    """Pure-JAX (f32) replica of the PyTorch forward for correctness checking."""
    inp = jnp.reshape(inp, (-1, md_group_size, md_dim)).astype(jnp.float32)
    query = jnp.reshape(query, (-1, 1, query_dim)).astype(jnp.float32)
    if use_null_token:
        zeros = jnp.zeros((inp.shape[0], 1, md_dim), dtype=inp.dtype)
        inp = jnp.concatenate([inp, zeros], axis=1)
    hk = inp @ w_key.T                                  # (B, G, H)
    hq = query @ w_query.T                              # (B, 1, H)
    scores = jnp.tanh(hq + hk) @ w_energy.T             # (B, G, 1)
    alphas = jax.nn.softmax(scores, axis=-1)            # degenerate -> ones
    alphas = jnp.swapaxes(alphas, -1, -2)               # (B, 1, G)
    return jnp.squeeze(alphas @ inp)                    # (B, D)


if __name__ == "__main__":
    # Module hyperparameters (small, consistent with the forward).
    md_dim = 32          # == hidden_dim
    query_dim = 16
    md_group_size = 8
    use_null_token = False
    B = 2

    key = jax.random.PRNGKey(0)
    k_in, k_q, k_wk, k_wq, k_we = jax.random.split(key, 5)

    # Deterministic parameter init (uniform +-1/sqrt(fan_in), like nn.Linear).
    def _linear_w(k, out_f, in_f):
        bound = 1.0 / math.sqrt(in_f)
        return jax.random.uniform(k, (out_f, in_f), jnp.float32, -bound, bound)

    w_key = _linear_w(k_wk, md_dim, md_dim)        # key_projection.weight
    w_query = _linear_w(k_wq, md_dim, query_dim)   # query_projection.weight
    w_energy = _linear_w(k_we, 1, md_dim)          # energy_projection.weight

    # Example inputs: 3-D input (B, G, D), 2-D query (B, Q).
    inp = jax.random.normal(k_in, (B, md_group_size, md_dim), jnp.float32)
    query = jax.random.normal(k_q, (B, query_dim), jnp.float32)

    out = bahdanau_attention(inp, query, w_key, w_query, w_energy,
                             md_dim, query_dim, md_group_size, use_null_token)
    out = jax.block_until_ready(out)

    ref = _reference(inp, query, w_key, w_query, w_energy,
                     md_dim, query_dim, md_group_size, use_null_token)
    assert out.shape == ref.shape, (out.shape, ref.shape)
    # Tolerance accounts for bf16 streaming of the input vectors (the context
    # is an exact f32 sum of 8 bf16-rounded group vectors).
    assert jnp.allclose(out, ref, atol=1e-1, rtol=5e-2), "mismatch vs reference"

    print("KERNEL_OK")
</pallas_src>

<mosaic_0001>
module attributes {stable_mosaic.version = 11 : i64} {
  func.func @_bahdanau_kernel(%arg0: i32, %arg1: memref<2x272xbf16, #tpu.memory_space<vmem>>, %arg2: memref<272x256xbf16, #tpu.memory_space<vmem>>, %arg3: memref<256x8xbf16, #tpu.memory_space<vmem>>, %arg4: memref<8x256xbf16, #tpu.memory_space<vmem>>, %arg5: memref<256x32xbf16, #tpu.memory_space<vmem>>, %arg6: memref<2x32xf32, #tpu.memory_space<vmem>>) attributes {dimension_semantics = [#tpu.dimension_semantics<parallel>], iteration_bounds = array<i64: 1>, scalar_prefetch = 0 : i64, scratch_operands = 0 : i64, tpu.core_type = #tpu.core_type<tc>, window_params = [{transform_indices = @transform_0, window_bounds = array<i64: 2, 272>}, {pipeline_mode = #tpu.pipeline_mode<synchronous>, transform_indices = @transform_1, window_bounds = array<i64: 272, 256>}, {pipeline_mode = #tpu.pipeline_mode<synchronous>, transform_indices = @transform_2, window_bounds = array<i64: 256, 8>}, {pipeline_mode = #tpu.pipeline_mode<synchronous>, transform_indices = @transform_3, window_bounds = array<i64: 8, 256>}, {pipeline_mode = #tpu.pipeline_mode<synchronous>, transform_indices = @transform_4, window_bounds = array<i64: 256, 32>}, {transform_indices = @transform_5, window_bounds = array<i64: 2, 32>}]} {
    %c0 = arith.constant 0 : index
    %c0_0 = arith.constant 0 : index
    %0 = vector.load %arg1[%c0, %c0_0] : memref<2x272xbf16, #tpu.memory_space<vmem>>, vector<2x272xbf16>
    %1 = vector.extract_strided_slice %0 {offsets = [0, 0], sizes = [2, 256], strides = [1, 1]} : vector<2x272xbf16> to vector<2x256xbf16>
    %c0_1 = arith.constant 0 : index
    %c0_2 = arith.constant 0 : index
    %2 = vector.load %arg2[%c0_1, %c0_2] : memref<272x256xbf16, #tpu.memory_space<vmem>>, vector<272x256xbf16>
    %cst = arith.constant dense<0.000000e+00> : vector<2x256xf32>
    %3 = tpu.matmul %0, %2, %cst {dimension_numbers = #tpu.dot_dimension_numbers<[1], [0], [0], [1], [0, 0, 1, 1], [], []>} : vector<2x272xbf16>, vector<272x256xbf16>, vector<2x256xf32> -> vector<2x256xf32>
    %4 = math.tanh %3 : vector<2x256xf32>
    %5 = arith.truncf %4 : vector<2x256xf32> to vector<2x256xbf16>
    %c0_3 = arith.constant 0 : index
    %c0_4 = arith.constant 0 : index
    %6 = vector.load %arg3[%c0_3, %c0_4] : memref<256x8xbf16, #tpu.memory_space<vmem>>, vector<256x8xbf16>
    %cst_5 = arith.constant dense<0.000000e+00> : vector<2x8xf32>
    %7 = tpu.matmul %5, %6, %cst_5 {dimension_numbers = #tpu.dot_dimension_numbers<[1], [0], [0], [1], [0, 0, 1, 1], [], []>} : vector<2x256xbf16>, vector<256x8xbf16>, vector<2x8xf32> -> vector<2x8xf32>
    %8 = arith.subf %7, %7 : vector<2x8xf32>
    %9 = math.exp %8 : vector<2x8xf32>
    %10 = arith.divf %9, %9 : vector<2x8xf32>
    %11 = arith.truncf %10 : vector<2x8xf32> to vector<2x8xbf16>
    %c0_6 = arith.constant 0 : index
    %c0_7 = arith.constant 0 : index
    %12 = vector.load %arg4[%c0_6, %c0_7] : memref<8x256xbf16, #tpu.memory_space<vmem>>, vector<8x256xbf16>
    %cst_8 = arith.constant dense<0.000000e+00> : vector<2x256xf32>
    %13 = tpu.matmul %11, %12, %cst_8 {dimension_numbers = #tpu.dot_dimension_numbers<[1], [0], [0], [1], [0, 0, 1, 1], [], []>} : vector<2x8xbf16>, vector<8x256xbf16>, vector<2x256xf32> -> vector<2x256xf32>
    %14 = arith.extf %1 : vector<2x256xbf16> to vector<2x256xf32>
    %15 = arith.mulf %13, %14 : vector<2x256xf32>
    %16 = arith.truncf %15 : vector<2x256xf32> to vector<2x256xbf16>
    %c0_9 = arith.constant 0 : index
    %c0_10 = arith.constant 0 : index
    %17 = vector.load %arg5[%c0_9, %c0_10] : memref<256x32xbf16, #tpu.memory_space<vmem>>, vector<256x32xbf16>
    %cst_11 = arith.constant dense<0.000000e+00> : vector<2x32xf32>
    %18 = tpu.matmul %16, %17, %cst_11 {dimension_numbers = #tpu.dot_dimension_numbers<[1], [0], [0], [1], [0, 0, 1, 1], [], []>} : vector<2x256xbf16>, vector<256x32xbf16>, vector<2x32xf32> -> vector<2x32xf32>
    %c0_12 = arith.constant 0 : index
    %c0_13 = arith.constant 0 : index
    %19 = vector.load %arg6[%c0_12, %c0_13] : memref<2x32xf32, #tpu.memory_space<vmem>>, vector<2x32xf32>
    tpu.vector_store %arg6[%c0_12, %c0_13], %18 {strides = array<i32>} : memref<2x32xf32, #tpu.memory_space<vmem>>, vector<2x32xf32>,
    return
  }
  func.func @transform_0(%arg0: i32) -> (i32, i32) {
    %c0_i32 = arith.constant 0 : i32
    %c0_i32_0 = arith.constant 0 : i32
    return %arg0, %c0_i32 : i32, i32
  }
  func.func @transform_1(%arg0: i32) -> (i32, i32) {
    %c0_i32 = arith.constant 0 : i32
    %c0_i32_0 = arith.constant 0 : i32
    %c0_i32_1 = arith.constant 0 : i32
    return %c0_i32, %c0_i32_0 : i32, i32
  }
  func.func @transform_2(%arg0: i32) -> (i32, i32) {
    %c0_i32 = arith.constant 0 : i32
    %c0_i32_0 = arith.constant 0 : i32
    %c0_i32_1 = arith.constant 0 : i32
    return %c0_i32, %c0_i32_0 : i32, i32
  }
  func.func @transform_3(%arg0: i32) -> (i32, i32) {
    %c0_i32 = arith.constant 0 : i32
    %c0_i32_0 = arith.constant 0 : i32
    %c0_i32_1 = arith.constant 0 : i32
    return %c0_i32, %c0_i32_0 : i32, i32
  }
  func.func @transform_4(%arg0: i32) -> (i32, i32) {
    %c0_i32 = arith.constant 0 : i32
    %c0_i32_0 = arith.constant 0 : i32
    %c0_i32_1 = arith.constant 0 : i32
    return %c0_i32, %c0_i32_0 : i32, i32
  }
  func.func @transform_5(%arg0: i32) -> (i32, i32) {
    %c0_i32 = arith.constant 0 : i32
    %c0_i32_0 = arith.constant 0 : i32
    return %arg0, %c0_i32 : i32, i32
  }
}

</mosaic_0001>

<llo_original>
// kernel: tpu_custom_call.1
$region0: #{tpu_custom_call.1}
  #allocation0 [shape = 'u32[]', space=smem, size = 0x4, offset = 0x4, fixed_abs, tag = 'smem constant byte address 0x4 - core index']
  #allocation1 [shape = 'u32[144,128]{1,0:T(1,128)}', space=vmem, size = 0x12000, scoped, tag = 'internal scratch']
  %s0 = inlined_call_operand.vmem [shape: bf16[2,272], index: 0, kind: input, shape index: {}]
  %s1 = inlined_call_operand.vmem [shape: bf16[272,256], index: 1, kind: input, shape index: {}]
  %s2 = inlined_call_operand.vmem [shape: bf16[256,8], index: 2, kind: input, shape index: {}]
  %s3 = inlined_call_operand.hbm [shape: bf16[8,256], index: 3, kind: input, shape index: {}]
  %s4 = inlined_call_operand.vmem [shape: bf16[256,32], index: 4, kind: input, shape index: {}]
  %s5 = inlined_call_operand.hbm [shape: f32[2,32], index: 5, kind: output, shape index: {}]
  %s6 = sld [smem:[#allocation0]]
  $region34: #{tpu_custom_call.1} parent=0
    _
  %s8 = ssub.s32 1, %s6
  %s9 = scalar_select 0, %s8, %s6
  $region1: #{tpu_custom_call.1} parent=0
    #allocation2 [shape = 'u8[4096]{0}', space=vmem, size = 0x1000, scoped, tag = 'input window, operand 3, single buffered']
    #allocation3 [shape = 's32[1]{0}', space=sflag, size = 0x4, scoped, tag = 'scoped memory for tpu_custom_call.1']
    #allocation4 [shape = 's32[1]{0}', space=sflag, size = 0x4, scoped, tag = 'scoped memory for tpu_custom_call.1']
    #allocation5 [shape = 'u8[1024]{0}', space=vmem, size = 0x400, scoped, tag = 'output window, operand 0, single buffered']
    %10 = vsyncpa [#allocation3], 0
    %11 = vsyncpa [#allocation4], 0
    // Predicated region
    $region2: #{tpu_custom_call.1} parent=1 // pred_check
      _
    $region3: #{tpu_custom_call.1} parent=1 // pred_check_branch
      %13 = sbr.rel (0) target = $region5
    $region4: #{tpu_custom_call.1} parent=1 // pred_region
      _
    $region5: #{tpu_custom_call.1} parent=1 // pred_fallthru
      _
    // Predicated region
    $region6: #{tpu_custom_call.1} parent=1 // pred_check
      _
    $region7: #{tpu_custom_call.1} parent=1 // pred_check_branch
      %15 = sbr.rel (0) target = $region9
    $region8: #{tpu_custom_call.1} parent=1 // pred_region
      _
    $region9: #{tpu_custom_call.1} parent=1 // pred_fallthru
      _
    // Predicated region
    $region10: #{tpu_custom_call.1} parent=1 // pred_check
      _
    $region11: #{tpu_custom_call.1} parent=1 // pred_check_branch
      %17 = sbr.rel (0) target = $region13
    $region12: #{tpu_custom_call.1} parent=1 // pred_region
      _
    $region13: #{tpu_custom_call.1} parent=1 // pred_fallthru
      _
    // Predicated region
    $region14: #{tpu_custom_call.1} parent=1 // pred_check
      _
    $region15: #{tpu_custom_call.1} parent=1 // pred_check_branch
      %19 = sbr.rel (0) target = $region17
    $region16: #{tpu_custom_call.1} parent=1 // pred_region
      %s21 = ssub.s32 128, 128
      %22 = vsyncadd [#allocation3], %s21
      %s24 = sshll.u32 [#allocation2], 4
      %s25 = int_to_ptr.vmem [resolvable:$true] %s24
      %27 = dma.hbm_to_vmem [thread:$0]  %s3, 128, %s25, [#allocation3]
    $region17: #{tpu_custom_call.1} parent=1 // pred_fallthru
      _
    // Predicated region
    $region18: #{tpu_custom_call.1} parent=1 // pred_check
      _
    $region19: #{tpu_custom_call.1} parent=1 // pred_check_branch
      %29 = sbr.rel (0) target = $region21
    $region20: #{tpu_custom_call.1} parent=1 // pred_region
      _
    $region21: #{tpu_custom_call.1} parent=1 // pred_fallthru
      _
    // Predicated region
    $region22: #{tpu_custom_call.1} parent=1 // pred_check
      _
    $region23: #{tpu_custom_call.1} parent=1 // pred_check_branch
      %31 = sbr.rel (0) target = $region25
    $region24: #{tpu_custom_call.1} parent=1 // pred_region
      %32 = dma.done [#allocation3], 128
    $region25: #{tpu_custom_call.1} parent=1 // pred_fallthru
      _
    %v34 = vld [vmem:[%s0] sm:$0x7]
    %v35 = vld [vmem:[%s1] sm:$0xff]
    %v36 = vld [vmem:[%s1 + $0x8] sm:$0xff]
    %v37 = vld [vmem:[%s1 + $0x10] sm:$0xff]
    %v38 = vld [vmem:[%s1 + $0x18] sm:$0xff]
    %v39 = vld [vmem:[%s1 + $0x20] sm:$0xff]
    %v40 = vld [vmem:[%s1 + $0x28] sm:$0xff]
    %v41 = vld [vmem:[%s1 + $0x30] sm:$0xff]
    %v42 = vld [vmem:[%s1 + $0x38] sm:$0xff]
    %v43 = vld [vmem:[%s1 + $0x40] sm:$0xff]
    %v44 = vld [vmem:[%s1 + $0x48] sm:$0xff]
    %v45 = vld [vmem:[%s1 + $0x50] sm:$0xff]
    %v46 = vld [vmem:[%s1 + $0x58] sm:$0xff]
    %v47 = vld [vmem:[%s1 + $0x60] sm:$0xff]
    %v48 = vld [vmem:[%s1 + $0x68] sm:$0xff]
    %v49 = vld [vmem:[%s1 + $0x70] sm:$0xff]
    %v50 = vld [vmem:[%s1 + $0x78] sm:$0xff]
    %v51 = vld [vmem:[%s1 + $0x80] sm:$0xff]
    %v52 = vld [vmem:[%s1 + $0x88] sm:$0xff]
    %v53 = vld [vmem:[%s1 + $0x90] sm:$0xff]
    %v54 = vld [vmem:[%s1 + $0x98] sm:$0xff]
    %v55 = vld [vmem:[%s1 + $0xa0] sm:$0xff]
    %v56 = vld [vmem:[%s1 + $0xa8] sm:$0xff]
    %v57 = vld [vmem:[%s1 + $0xb0] sm:$0xff]
    %v58 = vld [vmem:[%s1 + $0xb8] sm:$0xff]
    %v59 = vld [vmem:[%s1 + $0xc0] sm:$0xff]
    %v60 = vld [vmem:[%s1 + $0xc8] sm:$0xff]
    %v61 = vld [vmem:[%s1 + $0xd0] sm:$0xff]
    %v62 = vld [vmem:[%s1 + $0xd8] sm:$0xff]
    %v63 = vld [vmem:[%s1 + $0xe0] sm:$0xff]
    %v64 = vld [vmem:[%s1 + $0xe8] sm:$0xff]
    %v65 = vld [vmem:[%s1 + $0xf0] sm:$0xff]
    %v66 = vld [vmem:[%s1 + $0xf8] sm:$0xff]
    %v67 = vld [vmem:[%s1 + $0x100] sm:$0xff]
    %v68 = vld [vmem:[%s1 + $0x108] sm:$0xff]
    %v71 = vunpack.c.l.s4 1966171168
    %v72 = vunpack.c.0.s8 %v71
    %v73 = vlaneseq
    %v74 = vshrl.u32 %v73, 7
    %v75 = vsub.s32 %v72, %v74
    %v76 = vrot.slane %v34, %v75
    %v77 = vcombine.high %v76, %v76
    %v79 = vunpack.c.l.s4 1966171168
    %v80 = vunpack.c.0.s8 %v79
    %v81 = vlaneseq
    %v82 = vshrl.u32 %v81, 7
    %v83 = vsub.s32 %v80, %v82
    %v84 = vrot.slane %v76, %v83
    %v86 = vunpack.c.l.s4 1966171168
    %v87 = vunpack.c.0.s8 %v86
    %v88 = vlaneseq
    %v89 = vshrl.u32 %v88, 7
    %v90 = vsub.s32 %v87, %v89
    %v91 = vrot.slane %v77, %v90
    %v92 = vcombine.high %v84, %v84
    %v129 = vunpack.c.l.b16 %v35
    %v130 = vunpack.c.h.b16 %v35
    %v131 = vunpack.c.l.b16 %v36
    %v132 = vunpack.c.h.b16 %v36
    %v133 = vunpack.c.l.b16 %v37
    %v134 = vunpack.c.h.b16 %v37
    %v135 = vunpack.c.l.b16 %v38
    %v136 = vunpack.c.h.b16 %v38
    %v137 = vunpack.c.l.b16 %v39
    %v138 = vunpack.c.h.b16 %v39
    %v139 = vunpack.c.l.b16 %v40
    %v140 = vunpack.c.h.b16 %v40
    %v141 = vunpack.c.l.b16 %v41
    %v142 = vunpack.c.h.b16 %v41
    %v143 = vunpack.c.l.b16 %v42
    %v144 = vunpack.c.h.b16 %v42
    %v145 = vunpack.c.l.b16 %v43
    %v146 = vunpack.c.h.b16 %v43
    %v147 = vunpack.c.l.b16 %v44
    %v148 = vunpack.c.h.b16 %v44
    %v149 = vunpack.c.l.b16 %v45
    %v150 = vunpack.c.h.b16 %v45
    %v151 = vunpack.c.l.b16 %v46
    %v152 = vunpack.c.h.b16 %v46
    %v153 = vunpack.c.l.b16 %v47
    %v154 = vunpack.c.h.b16 %v47
    %v155 = vunpack.c.l.b16 %v48
    %v156 = vunpack.c.h.b16 %v48
    %v157 = vunpack.c.l.b16 %v49
    %v158 = vunpack.c.h.b16 %v49
    %v159 = vunpack.c.l.b16 %v50
    %v160 = vunpack.c.h.b16 %v50
    %v161 = vunpack.c.l.b16 %v51
    %v162 = vunpack.c.h.b16 %v51
    %v163 = vunpack.c.l.b16 %v52
    %v164 = vunpack.c.h.b16 %v52
    %v165 = vunpack.c.l.b16 %v53
    %v166 = vunpack.c.h.b16 %v53
    %v167 = vunpack.c.l.b16 %v54
    %v168 = vunpack.c.h.b16 %v54
    %v169 = vunpack.c.l.b16 %v55
    %v170 = vunpack.c.h.b16 %v55
    %v171 = vunpack.c.l.b16 %v56
    %v172 = vunpack.c.h.b16 %v56
    %v173 = vunpack.c.l.b16 %v57
    %v174 = vunpack.c.h.b16 %v57
    %v175 = vunpack.c.l.b16 %v58
    %v176 = vunpack.c.h.b16 %v58
    %v177 = vunpack.c.l.b16 %v59
    %v178 = vunpack.c.h.b16 %v59
    %v179 = vunpack.c.l.b16 %v60
    %v180 = vunpack.c.h.b16 %v60
    %v181 = vunpack.c.l.b16 %v61
    %v182 = vunpack.c.h.b16 %v61
    %v183 = vunpack.c.l.b16 %v62
    %v184 = vunpack.c.h.b16 %v62
    %v185 = vunpack.c.l.b16 %v63
    %v186 = vunpack.c.h.b16 %v63
    %v187 = vunpack.c.l.b16 %v64
    %v188 = vunpack.c.h.b16 %v64
    %v189 = vunpack.c.l.b16 %v65
    %v190 = vunpack.c.h.b16 %v65
    %v191 = vunpack.c.l.b16 %v66
    %v192 = vunpack.c.h.b16 %v66
    %v193 = vunpack.c.l.b16 %v67
    %v194 = vunpack.c.h.b16 %v67
    %v195 = vunpack.c.l.b16 %v68
    %v196 = vunpack.c.h.b16 %v68
    %v197 = vpack.c.b16 %v131, %v129
    %v198 = vpack.c.b16 %v132, %v130
    %v199 = vpack.c.b16 %v135, %v133
    %v200 = vpack.c.b16 %v136, %v134
    %v201 = vpack.c.b16 %v139, %v137
    %v202 = vpack.c.b16 %v140, %v138
    %v203 = vpack.c.b16 %v143, %v141
    %v204 = vpack.c.b16 %v144, %v142
    %v205 = vpack.c.b16 %v147, %v145
    %v206 = vpack.c.b16 %v148, %v146
    %v207 = vpack.c.b16 %v151, %v149
    %v208 = vpack.c.b16 %v152, %v150
    %v209 = vpack.c.b16 %v155, %v153
    %v210 = vpack.c.b16 %v156, %v154
    %v211 = vpack.c.b16 %v159, %v157
    %v212 = vpack.c.b16 %v160, %v158
    %v213 = vpack.c.b16 %v163, %v161
    %v214 = vpack.c.b16 %v164, %v162
    %v215 = vpack.c.b16 %v167, %v165
    %v216 = vpack.c.b16 %v168, %v166
    %v217 = vpack.c.b16 %v171, %v169
    %v218 = vpack.c.b16 %v172, %v170
    %v219 = vpack.c.b16 %v175, %v173
    %v220 = vpack.c.b16 %v176, %v174
    %v221 = vpack.c.b16 %v179, %v177
    %v222 = vpack.c.b16 %v180, %v178
    %v223 = vpack.c.b16 %v183, %v181
    %v224 = vpack.c.b16 %v184, %v182
    %v225 = vpack.c.b16 %v187, %v185
    %v226 = vpack.c.b16 %v188, %v186
    %v227 = vpack.c.b16 %v191, %v189
    %v228 = vpack.c.b16 %v192, %v190
    %v229 = vpack.c.b16 %v195, %v193
    %v230 = vpack.c.b16 %v196, %v194
    %vm265 = vcmask 130048
    %v267 = vsel %vm265, %v92, 0
    %269 = vmatprep.subr.bf16.mxu0 %v198
    %270 = vmatpush1.bf16.msra.mxu0 %v197
    %271 = vmatprep.subr.bf16.mxu0 %v200
    %272 = vmatpush1.bf16.msra.mxu0 %v199
    %273 = vmatprep.subr.bf16.mxu0 %v202
    %274 = vmatpush1.bf16.msra.mxu0 %v201
    %275 = vmatprep.subr.bf16.mxu0 %v204
    %276 = vmatpush1.bf16.msra.mxu0 %v203
    %277 = vmatprep.subr.bf16.mxu0 %v206
    %278 = vmatpush1.bf16.msra.mxu0 %v205
    %279 = vmatprep.subr.bf16.mxu0 %v208
    %280 = vmatpush1.bf16.msra.mxu0 %v207
    %281 = vmatprep.subr.bf16.mxu0 %v210
    %282 = vmatpush1.bf16.msra.mxu0 %v209
    %283 = vmatprep.subr.bf16.mxu0 %v212
    %284 = vmatpush1.bf16.msra.mxu0 %v211
    %285 = vmatprep.subr.bf16.mxu0 %v214
    %286 = vmatpush1.bf16.msra.mxu0 %v213
    %287 = vmatprep.subr.bf16.mxu0 %v216
    %288 = vmatpush1.bf16.msra.mxu0 %v215
    %289 = vmatprep.subr.bf16.mxu0 %v218
    %290 = vmatpush1.bf16.msra.mxu0 %v217
    %291 = vmatprep.subr.bf16.mxu0 %v220
    %292 = vmatpush1.bf16.msra.mxu0 %v219
    %293 = vmatprep.subr.bf16.mxu0 %v222
    %294 = vmatpush1.bf16.msra.mxu0 %v221
    %295 = vmatprep.subr.bf16.mxu0 %v224
    %296 = vmatpush1.bf16.msra.mxu0 %v223
    %297 = vmatprep.subr.bf16.mxu0 %v226
    %298 = vmatpush1.bf16.msra.mxu0 %v225
    %299 = vmatprep.subr.bf16.mxu0 %v228
    %300 = vmatpush1.bf16.msra.mxu0 %v227
    %301 = vmatprep.mubr.bf16.mxu0 %v91
    %302 = vmatmul.mubr.bf16.gmra.mrb[0].mxu0 %v84
    %v303 = vpop.f32.mrb[0].mxu0
    %v304 = vadd.f32 0.0, %v303
    %v305 = vpop.f32.mrb[0].mxu0
    %v306 = vadd.f32 0.0, %v305
    %v307 = vpop.f32.mrb[0].mxu0
    %v308 = vpop.f32.mrb[0].mxu0
    %309 = vdwg.mxu0
    %310 = vmatprep.subr.bf16.mxu0 %v230
    %311 = vmatpush1.bf16.msra.mxu0 %v229
    %312 = vmatprep.subr.bf16.mxu0 0
    %313 = vmatpush1.bf16.msra.mxu0 0
    %314 = vmatprep.subr.bf16.mxu0 0
    %315 = vmatpush1.bf16.msra.mxu0 0
    %316 = vmatprep.subr.bf16.mxu0 0
    %317 = vmatpush1.bf16.msra.mxu0 0
    %318 = vmatprep.subr.bf16.mxu0 0
    %319 = vmatpush1.bf16.msra.mxu0 0
    %320 = vmatprep.subr.bf16.mxu0 0
    %321 = vmatpush1.bf16.msra.mxu0 0
    %322 = vmatprep.subr.bf16.mxu0 0
    %323 = vmatpush1.bf16.msra.mxu0 0
    %324 = vmatprep.subr.bf16.mxu0 0
    %325 = vmatpush1.bf16.msra.mxu0 0
    %326 = vmatprep.subr.bf16.mxu0 0
    %327 = vmatpush1.bf16.msra.mxu0 0
    %328 = vmatprep.subr.bf16.mxu0 0
    %329 = vmatpush1.bf16.msra.mxu0 0
    %330 = vmatprep.subr.bf16.mxu0 0
    %331 = vmatpush1.bf16.msra.mxu0 0
    %332 = vmatprep.subr.bf16.mxu0 0
    %333 = vmatpush1.bf16.msra.mxu0 0
    %334 = vmatprep.subr.bf16.mxu0 0
    %335 = vmatpush1.bf16.msra.mxu0 0
    %336 = vmatprep.subr.bf16.mxu0 0
    %337 = vmatpush1.bf16.msra.mxu0 0
    %338 = vmatprep.subr.bf16.mxu0 0
    %339 = vmatpush1.bf16.msra.mxu0 0
    %340 = vmatprep.subr.bf16.mxu0 0
    %341 = vmatpush1.bf16.msra.mxu0 0
    %342 = vmatprep.mubr.bf16.mxu0 0
    %343 = vmatmul.mubr.bf16.gmra.mrb[0].mxu0 %v267
    %v344 = vpop.f32.mrb[0].mxu0
    %v345 = vadd.f32 %v304, %v344
    %v346 = vpop.f32.mrb[0].mxu0
    %v347 = vadd.f32 %v306, %v346
    %v348 = vpop.f32.mrb[0].mxu0
    %v349 = vpop.f32.mrb[0].mxu0
    %350 = vdwg.mxu0
    %v351 = vtanh.pop %v345
    %v352 = vtanh.pop %v347
    %v353 = vpack.c.bf16 %v351, %v351
    %v354 = vpack.c.bf16 %v352, %v352
    %v355 = vld [vmem:[%s2] sm:$0xf]
    %v356 = vld [vmem:[%s2 + $0x4] sm:$0xf]
    %v357 = vld [vmem:[%s2 + $0x8] sm:$0xf]
    %v358 = vld [vmem:[%s2 + $0xc] sm:$0xf]
    %v359 = vld [vmem:[%s2 + $0x10] sm:$0xf]
    %v360 = vld [vmem:[%s2 + $0x14] sm:$0xf]
    %v361 = vld [vmem:[%s2 + $0x18] sm:$0xf]
    %v362 = vld [vmem:[%s2 + $0x1c] sm:$0xf]
    %v363 = vld [vmem:[%s2 + $0x20] sm:$0xf]
    %v364 = vld [vmem:[%s2 + $0x24] sm:$0xf]
    %v365 = vld [vmem:[%s2 + $0x28] sm:$0xf]
    %v366 = vld [vmem:[%s2 + $0x2c] sm:$0xf]
    %v367 = vld [vmem:[%s2 + $0x30] sm:$0xf]
    %v368 = vld [vmem:[%s2 + $0x34] sm:$0xf]
    %v369 = vld [vmem:[%s2 + $0x38] sm:$0xf]
    %v370 = vld [vmem:[%s2 + $0x3c] sm:$0xf]
    %v371 = vld [vmem:[%s2 + $0x40] sm:$0xf]
    %v372 = vld [vmem:[%s2 + $0x44] sm:$0xf]
    %v373 = vld [vmem:[%s2 + $0x48] sm:$0xf]
    %v374 = vld [vmem:[%s2 + $0x4c] sm:$0xf]
    %v375 = vld [vmem:[%s2 + $0x50] sm:$0xf]
    %v376 = vld [vmem:[%s2 + $0x54] sm:$0xf]
    %v377 = vld [vmem:[%s2 + $0x58] sm:$0xf]
    %v378 = vld [vmem:[%s2 + $0x5c] sm:$0xf]
    %v379 = vld [vmem:[%s2 + $0x60] sm:$0xf]
    %v380 = vld [vmem:[%s2 + $0x64] sm:$0xf]
    %v381 = vld [vmem:[%s2 + $0x68] sm:$0xf]
    %v382 = vld [vmem:[%s2 + $0x6c] sm:$0xf]
    %v383 = vld [vmem:[%s2 + $0x70] sm:$0xf]
    %v384 = vld [vmem:[%s2 + $0x74] sm:$0xf]
    %v385 = vld [vmem:[%s2 + $0x78] sm:$0xf]
    %v386 = vld [vmem:[%s2 + $0x7c] sm:$0xf]
    %v419 = vunpack.c.l.b16 %v355
    %v420 = vunpack.c.l.b16 %v356
    %v421 = vunpack.c.l.b16 %v357
    %v422 = vunpack.c.l.b16 %v358
    %v423 = vunpack.c.l.b16 %v359
    %v424 = vunpack.c.l.b16 %v360
    %v425 = vunpack.c.l.b16 %v361
    %v426 = vunpack.c.l.b16 %v362
    %v427 = vunpack.c.l.b16 %v363
    %v428 = vunpack.c.l.b16 %v364
    %v429 = vunpack.c.l.b16 %v365
    %v430 = vunpack.c.l.b16 %v366
    %v431 = vunpack.c.l.b16 %v367
    %v432 = vunpack.c.l.b16 %v368
    %v433 = vunpack.c.l.b16 %v369
    %v434 = vunpack.c.l.b16 %v370
    %v435 = vunpack.c.l.b16 %v371
    %v436 = vunpack.c.l.b16 %v372
    %v437 = vunpack.c.l.b16 %v373
    %v438 = vunpack.c.l.b16 %v374
    %v439 = vunpack.c.l.b16 %v375
    %v440 = vunpack.c.l.b16 %v376
    %v441 = vunpack.c.l.b16 %v377
    %v442 = vunpack.c.l.b16 %v378
    %v443 = vunpack.c.l.b16 %v379
    %v444 = vunpack.c.l.b16 %v380
    %v445 = vunpack.c.l.b16 %v381
    %v446 = vunpack.c.l.b16 %v382
    %v447 = vunpack.c.l.b16 %v383
    %v448 = vunpack.c.l.b16 %v384
    %v449 = vunpack.c.l.b16 %v385
    %v450 = vunpack.c.l.b16 %v386
    %v451 = vpack.c.b16 %v420, %v419
    %v452 = vpack.c.b16 %v422, %v421
    %v453 = vpack.c.b16 %v424, %v423
    %v454 = vpack.c.b16 %v426, %v425
    %v455 = vpack.c.b16 %v428, %v427
    %v456 = vpack.c.b16 %v430, %v429
    %v457 = vpack.c.b16 %v432, %v431
    %v458 = vpack.c.b16 %v434, %v433
    %v459 = vpack.c.b16 %v436, %v435
    %v460 = vpack.c.b16 %v438, %v437
    %v461 = vpack.c.b16 %v440, %v439
    %v462 = vpack.c.b16 %v442, %v441
    %v463 = vpack.c.b16 %v444, %v443
    %v464 = vpack.c.b16 %v446, %v445
    %v465 = vpack.c.b16 %v448, %v447
    %v466 = vpack.c.b16 %v450, %v449
    %483 = vmatprep.subr.bf16.mxu0 0
    %484 = vmatpush1.bf16.msra.mxu0 %v451
    %485 = vmatprep.subr.bf16.mxu0 0
    %486 = vmatpush1.bf16.msra.mxu0 %v452
    %487 = vmatprep.subr.bf16.mxu0 0
    %488 = vmatpush1.bf16.msra.mxu0 %v453
    %489 = vmatprep.subr.bf16.mxu0 0
    %490 = vmatpush1.bf16.msra.mxu0 %v454
    %491 = vmatprep.subr.bf16.mxu0 0
    %492 = vmatpush1.bf16.msra.mxu0 %v455
    %493 = vmatprep.subr.bf16.mxu0 0
    %494 = vmatpush1.bf16.msra.mxu0 %v456
    %495 = vmatprep.subr.bf16.mxu0 0
    %496 = vmatpush1.bf16.msra.mxu0 %v457
    %497 = vmatprep.subr.bf16.mxu0 0
    %498 = vmatpush1.bf16.msra.mxu0 %v458
    %499 = vmatprep.subr.bf16.mxu0 0
    %500 = vmatpush1.bf16.msra.mxu0 %v459
    %501 = vmatprep.subr.bf16.mxu0 0
    %502 = vmatpush1.bf16.msra.mxu0 %v460
    %503 = vmatprep.subr.bf16.mxu0 0
    %504 = vmatpush1.bf16.msra.mxu0 %v461
    %505 = vmatprep.subr.bf16.mxu0 0
    %506 = vmatpush1.bf16.msra.mxu0 %v462
    %507 = vmatprep.subr.bf16.mxu0 0
    %508 = vmatpush1.bf16.msra.mxu0 %v463
    %509 = vmatprep.subr.bf16.mxu0 0
    %510 = vmatpush1.bf16.msra.mxu0 %v464
    %511 = vmatprep.subr.bf16.mxu0 0
    %512 = vmatpush1.bf16.msra.mxu0 %v465
    %513 = vmatprep.subr.bf16.mxu0 0
    %514 = vmatpush1.bf16.msra.mxu0 %v466
    %515 = vmatprep.mubr.bf16.mxu0 %v354
    %516 = vmatmul.mubr.bf16.gmra.mrb[0].mxu0 %v353
    %v517 = vpop.f32.mrb[0].mxu0
    %v518 = vadd.f32 0.0, %v517
    %v519 = vpop.f32.mrb[0].mxu0
    %v520 = vpop.f32.mrb[0].mxu0
    %v521 = vpop.f32.mrb[0].mxu0
    %522 = vdwg.mxu0
    %v523 = vsub.f32 %v518, %v518
    %v524 = vmul.f32 %v523, 1.442695
    %v525 = vpow.pop %v524
    %v526 = vrcp.pop %v525
    %v527 = vmul.f32 %v525, %v526
    %v528 = vpack.c.bf16 %v527, %v527
    %v529 = vld [vmem:[#allocation2] sm:$0xff]
    %v531 = vunpack.c.l.b16 %v529
    %v532 = vunpack.c.h.b16 %v529
    %v533 = vpack.c.b16 %v531, %v531
    %v534 = vpack.c.b16 %v532, %v532
    %vm535 = vcmask 64512
    %v537 = vsel %vm535, %v528, 0
    %vm539 = vcmask 1043456
    %v541 = vsel %vm539, %v533, 0
    %v544 = vsel %vm539, %v534, 0
    %546 = vmatprep.subr.bf16.mxu0 %v544
    %547 = vmatpush1.bf16.msra.mxu0 %v541
    %548 = vmatprep.subr.bf16.mxu0 0
    %549 = vmatpush1.bf16.msra.mxu0 0
    %550 = vmatprep.subr.bf16.mxu0 0
    %551 = vmatpush1.bf16.msra.mxu0 0
    %552 = vmatprep.subr.bf16.mxu0 0
    %553 = vmatpush1.bf16.msra.mxu0 0
    %554 = vmatprep.subr.bf16.mxu0 0
    %555 = vmatpush1.bf16.msra.mxu0 0
    %556 = vmatprep.subr.bf16.mxu0 0
    %557 = vmatpush1.bf16.msra.mxu0 0
    %558 = vmatprep.subr.bf16.mxu0 0
    %559 = vmatpush1.bf16.msra.mxu0 0
    %560 = vmatprep.subr.bf16.mxu0 0
    %561 = vmatpush1.bf16.msra.mxu0 0
    %562 = vmatprep.subr.bf16.mxu0 0
    %563 = vmatpush1.bf16.msra.mxu0 0
    %564 = vmatprep.subr.bf16.mxu0 0
    %565 = vmatpush1.bf16.msra.mxu0 0
    %566 = vmatprep.subr.bf16.mxu0 0
    %567 = vmatpush1.bf16.msra.mxu0 0
    %568 = vmatprep.subr.bf16.mxu0 0
    %569 = vmatpush1.bf16.msra.mxu0 0
    %570 = vmatprep.subr.bf16.mxu0 0
    %571 = vmatpush1.bf16.msra.mxu0 0
    %572 = vmatprep.subr.bf16.mxu0 0
    %573 = vmatpush1.bf16.msra.mxu0 0
    %574 = vmatprep.subr.bf16.mxu0 0
    %575 = vmatpush1.bf16.msra.mxu0 0
    %576 = vmatprep.subr.bf16.mxu0 0
    %577 = vmatpush1.bf16.msra.mxu0 0
    %578 = vmatprep.mubr.bf16.mxu0 0
    %579 = vmatmul.mubr.bf16.gmra.mrb[0].mxu0 %v537
    %v580 = vpop.f32.mrb[0].mxu0
    %v581 = vadd.f32 0.0, %v580
    %v582 = vpop.f32.mrb[0].mxu0
    %v583 = vadd.f32 0.0, %v582
    %v584 = vpop.f32.mrb[0].mxu0
    %v585 = vpop.f32.mrb[0].mxu0
    %586 = vdwg.mxu0
    %v587 = vunpack.c.l.bf16 %v34
    %v590 = vunpack.c.l.s4 1983009808
    %v591 = vunpack.c.0.s8 %v590
    %v592 = vlaneseq
    %v593 = vshrl.u32 %v592, 7
    %v594 = vsub.s32 %v591, %v593
    %v595 = vrot.slane %v587, %v594
    %v596 = vcombine.high %v595, %v595
    %v599 = vmul.f32 %v581, %v595
    %v600 = vmul.f32 %v583, %v596
    %v601 = vpack.c.bf16 %v599, %v599
    %v602 = vpack.c.bf16 %v600, %v600
    %v603 = vld [vmem:[%s4] sm:$0xf]
    %v604 = vld [vmem:[%s4 + $0x4] sm:$0xf]
    %v605 = vld [vmem:[%s4 + $0x8] sm:$0xf]
    %v606 = vld [vmem:[%s4 + $0xc] sm:$0xf]
    %v607 = vld [vmem:[%s4 + $0x10] sm:$0xf]
    %v608 = vld [vmem:[%s4 + $0x14] sm:$0xf]
    %v609 = vld [vmem:[%s4 + $0x18] sm:$0xf]
    %v610 = vld [vmem:[%s4 + $0x1c] sm:$0xf]
    %v611 = vld [vmem:[%s4 + $0x20] sm:$0xf]
    %v612 = vld [vmem:[%s4 + $0x24] sm:$0xf]
    %v613 = vld [vmem:[%s4 + $0x28] sm:$0xf]
    %v614 = vld [vmem:[%s4 + $0x2c] sm:$0xf]
    %v615 = vld [vmem:[%s4 + $0x30] sm:$0xf]
    %v616 = vld [vmem:[%s4 + $0x34] sm:$0xf]
    %v617 = vld [vmem:[%s4 + $0x38] sm:$0xf]
    %v618 = vld [vmem:[%s4 + $0x3c] sm:$0xf]
    %v619 = vld [vmem:[%s4 + $0x40] sm:$0xf]
    %v620 = vld [vmem:[%s4 + $0x44] sm:$0xf]
    %v621 = vld [vmem:[%s4 + $0x48] sm:$0xf]
    %v622 = vld [vmem:[%s4 + $0x4c] sm:$0xf]
    %v623 = vld [vmem:[%s4 + $0x50] sm:$0xf]
    %v624 = vld [vmem:[%s4 + $0x54] sm:$0xf]
    %v625 = vld [vmem:[%s4 + $0x58] sm:$0xf]
    %v626 = vld [vmem:[%s4 + $0x5c] sm:$0xf]
    %v627 = vld [vmem:[%s4 + $0x60] sm:$0xf]
    %v628 = vld [vmem:[%s4 + $0x64] sm:$0xf]
    %v629 = vld [vmem:[%s4 + $0x68] sm:$0xf]
    %v630 = vld [vmem:[%s4 + $0x6c] sm:$0xf]
    %v631 = vld [vmem:[%s4 + $0x70] sm:$0xf]
    %v632 = vld [vmem:[%s4 + $0x74] sm:$0xf]
    %v633 = vld [vmem:[%s4 + $0x78] sm:$0xf]
    %v634 = vld [vmem:[%s4 + $0x7c] sm:$0xf]
    %v667 = vunpack.c.l.b16 %v603
    %v668 = vunpack.c.l.b16 %v604
    %v669 = vunpack.c.l.b16 %v605
    %v670 = vunpack.c.l.b16 %v606
    %v671 = vunpack.c.l.b16 %v607
    %v672 = vunpack.c.l.b16 %v608
    %v673 = vunpack.c.l.b16 %v609
    %v674 = vunpack.c.l.b16 %v610
    %v675 = vunpack.c.l.b16 %v611
    %v676 = vunpack.c.l.b16 %v612
    %v677 = vunpack.c.l.b16 %v613
    %v678 = vunpack.c.l.b16 %v614
    %v679 = vunpack.c.l.b16 %v615
    %v680 = vunpack.c.l.b16 %v616
    %v681 = vunpack.c.l.b16 %v617
    %v682 = vunpack.c.l.b16 %v618
    %v683 = vunpack.c.l.b16 %v619
    %v684 = vunpack.c.l.b16 %v620
    %v685 = vunpack.c.l.b16 %v621
    %v686 = vunpack.c.l.b16 %v622
    %v687 = vunpack.c.l.b16 %v623
    %v688 = vunpack.c.l.b16 %v624
    %v689 = vunpack.c.l.b16 %v625
    %v690 = vunpack.c.l.b16 %v626
    %v691 = vunpack.c.l.b16 %v627
    %v692 = vunpack.c.l.b16 %v628
    %v693 = vunpack.c.l.b16 %v629
    %v694 = vunpack.c.l.b16 %v630
    %v695 = vunpack.c.l.b16 %v631
    %v696 = vunpack.c.l.b16 %v632
    %v697 = vunpack.c.l.b16 %v633
    %v698 = vunpack.c.l.b16 %v634
    %v699 = vpack.c.b16 %v668, %v667
    %v700 = vpack.c.b16 %v670, %v669
    %v701 = vpack.c.b16 %v672, %v671
    %v702 = vpack.c.b16 %v674, %v673
    %v703 = vpack.c.b16 %v676, %v675
    %v704 = vpack.c.b16 %v678, %v677
    %v705 = vpack.c.b16 %v680, %v679
    %v706 = vpack.c.b16 %v682, %v681
    %v707 = vpack.c.b16 %v684, %v683
    %v708 = vpack.c.b16 %v686, %v685
    %v709 = vpack.c.b16 %v688, %v687
    %v710 = vpack.c.b16 %v690, %v689
    %v711 = vpack.c.b16 %v692, %v691
    %v712 = vpack.c.b16 %v694, %v693
    %v713 = vpack.c.b16 %v696, %v695
    %v714 = vpack.c.b16 %v698, %v697
    %731 = vmatprep.subr.bf16.mxu0 0
    %732 = vmatpush1.bf16.msra.mxu0 %v699
    %733 = vmatprep.subr.bf16.mxu0 0
    %734 = vmatpush1.bf16.msra.mxu0 %v700
    %735 = vmatprep.subr.bf16.mxu0 0
    %736 = vmatpush1.bf16.msra.mxu0 %v701
    %737 = vmatprep.subr.bf16.mxu0 0
    %738 = vmatpush1.bf16.msra.mxu0 %v702
    %739 = vmatprep.subr.bf16.mxu0 0
    %740 = vmatpush1.bf16.msra.mxu0 %v703
    %741 = vmatprep.subr.bf16.mxu0 0
    %742 = vmatpush1.bf16.msra.mxu0 %v704
    %743 = vmatprep.subr.bf16.mxu0 0
    %744 = vmatpush1.bf16.msra.mxu0 %v705
    %745 = vmatprep.subr.bf16.mxu0 0
    %746 = vmatpush1.bf16.msra.mxu0 %v706
    %747 = vmatprep.subr.bf16.mxu0 0
    %748 = vmatpush1.bf16.msra.mxu0 %v707
    %749 = vmatprep.subr.bf16.mxu0 0
    %750 = vmatpush1.bf16.msra.mxu0 %v708
    %751 = vmatprep.subr.bf16.mxu0 0
    %752 = vmatpush1.bf16.msra.mxu0 %v709
    %753 = vmatprep.subr.bf16.mxu0 0
    %754 = vmatpush1.bf16.msra.mxu0 %v710
    %755 = vmatprep.subr.bf16.mxu0 0
    %756 = vmatpush1.bf16.msra.mxu0 %v711
    %757 = vmatprep.subr.bf16.mxu0 0
    %758 = vmatpush1.bf16.msra.mxu0 %v712
    %759 = vmatprep.subr.bf16.mxu0 0
    %760 = vmatpush1.bf16.msra.mxu0 %v713
    %761 = vmatprep.subr.bf16.mxu0 0
    %762 = vmatpush1.bf16.msra.mxu0 %v714
    %763 = vmatprep.mubr.bf16.mxu0 %v602
    %764 = vmatmul.mubr.bf16.gmra.mrb[0].mxu0 %v601
    %v765 = vpop.f32.mrb[0].mxu0
    %v766 = vadd.f32 0.0, %v765
    %v767 = vpop.f32.mrb[0].mxu0
    %v768 = vpop.f32.mrb[0].mxu0
    %v769 = vpop.f32.mrb[0].mxu0
    %770 = vdwg.mxu0
    %vm771 = vcmask 254976
    %772 = vst.msk [vmem:[#allocation5] sm:$0x3] %vm771, %v766
    // Predicated region
    $region26: #{tpu_custom_call.1} parent=1 // pred_check
      _
    $region27: #{tpu_custom_call.1} parent=1 // pred_check_branch
      %774 = sbr.rel (0) target = $region29
    $region28: #{tpu_custom_call.1} parent=1 // pred_region
      %s776 = ssub.s32 32, 32
      %777 = vsyncadd [#allocation4], %s776
      %s779 = sshll.u32 [#allocation5], 4
      %s780 = int_to_ptr.vmem [resolvable:$true] %s779
      %782 = dma.vmem_to_hbm [thread:$0]  %s780, 32, %s5, [#allocation4]
    $region29: #{tpu_custom_call.1} parent=1 // pred_fallthru
      _
    // Predicated region
    $region30: #{tpu_custom_call.1} parent=1 // pred_check
      _
    $region31: #{tpu_custom_call.1} parent=1 // pred_check_branch
      %784 = sbr.rel (0) target = $region33
    $region32: #{tpu_custom_call.1} parent=1 // pred_region
      %785 = dma.done [#allocation4], 32
    $region33: #{tpu_custom_call.1} parent=1 // pred_fallthru
      _
    %786 = vsyncpa [#allocation3], 1
    %787 = vsyncpa [#allocation4], 1

</llo_original>
